<compile_context>
chip_gen: v7x
topology: tpu7x:2x2x1
jax: 0.10.0
libtpu: 0.0.40
codegen_flags: <defaults>
</compile_context>

<pallas_src>
import jax
import jax.numpy as jnp
from jax.experimental import pallas as pl
from jax.experimental.pallas import tpu as pltpu


def _scalar_kernel(const_ref, out_ref):
    # Entire "forward pass": pass the scalar parameter through (one sld + sst
    # on the scalar path).
    out_ref[0] = const_ref[0]


@jax.jit
def scalar_forward(constant: jax.Array) -> jax.Array:
    """Pallas equivalent of Scalar.forward(): returns the scalar parameter.

    constant: float32 array of shape () (the learnable parameter).
    Returns a float32 scalar (shape ()).
    """
    # Reshape to (1,) is layout metadata only under jit.
    const_1d = constant.reshape(1)
    out = pl.pallas_call(
        _scalar_kernel,
        out_shape=jax.ShapeDtypeStruct((1,), jnp.float32),
        # 4-byte working set -> keep it on the scalar path (SMEM); a VMEM tile
        # would be padded to (8, 128) and add a pointless DMA.
        in_specs=[pl.BlockSpec(memory_space=pltpu.SMEM)],
        out_specs=pl.BlockSpec(memory_space=pltpu.SMEM),
        # Advisory: this custom call is essentially free — don't budget for it.
        cost_estimate=pl.CostEstimate(flops=0, transcendentals=0, bytes_accessed=8),
    )(const_1d)
    return out.reshape(())


class ScalarPallas:
    """Mirror of the torch Scalar module (parameter container + forward)."""

    def __init__(self, init_value: float):
        # The learnable parameter, 0-d float32 to match torch's scalar Parameter.
        self.constant = jnp.asarray(init_value, dtype=jnp.float32)

    def __call__(self) -> jax.Array:
        # Default / production path (perf review item 1): forward() is the
        # identity on the parameter, so return it and let XLA fuse or
        # constant-fold it into the consuming graph (e.g. SAC alpha loss).
        return self.constant

    def forward_kernel(self) -> jax.Array:
        # Compliance path: the standalone Pallas kernel.  The (1,) view is
        # derived from the *current* parameter inside the jitted function, so
        # parameter updates are always reflected.
        return scalar_forward(self.constant)


if __name__ == "__main__":
    # The module's forward takes no inputs; init_value is derived
    # deterministically from PRNGKey(0) just to exercise the pipeline.
    key = jax.random.PRNGKey(0)
    init_value = float(jax.random.uniform(key, ()))  # deterministic scalar

    module = ScalarPallas(init_value)

    # Run the Pallas kernel once (compliance path).
    result = module.forward_kernel()
    jax.block_until_ready(result)

    # Sanity checks: kernel output must equal the stored parameter exactly.
    assert result.shape == ()
    assert result.dtype == jnp.float32
    assert bool(jnp.array_equal(result, module.constant))

    # Second call: must still match (no aliasing, no consumed buffers).
    result2 = module.forward_kernel()
    jax.block_until_ready(result2)
    assert bool(jnp.array_equal(result2, module.constant))

    # Parameter update must be reflected (no stale staged copy).
    module.constant = module.constant + jnp.float32(0.5)
    result3 = module.forward_kernel()
    jax.block_until_ready(result3)
    assert bool(jnp.array_equal(result3, module.constant))

    # Zero-overhead identity path (default __call__) agrees with the kernel path.
    assert bool(jnp.array_equal(module(), module.constant))

    print("KERNEL_OK")
</pallas_src>

<mosaic_0001>
module attributes {stable_mosaic.version = 11 : i64} {
  func.func @_scalar_kernel(%arg0: memref<1xf32, #tpu.memory_space<smem>>, %arg1: memref<1xf32, #tpu.memory_space<smem>>) attributes {dimension_semantics = [], scalar_prefetch = 0 : i64, scratch_operands = 0 : i64, tpu.core_type = #tpu.core_type<tc>} {
    %c0 = arith.constant 0 : index
    %0 = memref.load %arg0[%c0] : memref<1xf32, #tpu.memory_space<smem>>
    %c0_0 = arith.constant 0 : index
    %1 = memref.load %arg1[%c0_0] : memref<1xf32, #tpu.memory_space<smem>>
    memref.store %0, %arg1[%c0_0] : memref<1xf32, #tpu.memory_space<smem>>
    return
  }
}

</mosaic_0001>

<llo_original>
// kernel: scalar_forward.1
$region0: #{scalar_forward.1}
  #allocation0 [shape = 'u32[]', space=smem, size = 0x4, offset = 0x4, fixed_abs, tag = 'smem constant byte address 0x4 - core index']
  #allocation1 [shape = 'u32[144,128]{1,0:T(1,128)}', space=vmem, size = 0x12000, scoped, tag = 'internal scratch']
  #allocation2 [shape = 'f32[1]{0:T(128)S(6)}', space=smem, size = 0x200, scoped, tag = 'scoped memory for scalar_forward.1']
  %s0 = inlined_call_operand.<no memory space> [shape: f32[1], index: 0, kind: input, shape index: {}]
  %s1 = inlined_call_operand.hbm [shape: f32[1], index: 1, kind: output, shape index: {}]
  %s2 = sld [smem:[#allocation0]]
  $region14: #{scalar_forward.1} parent=0
    _
  %s4 = ssub.s32 1, %s2
  %s5 = scalar_select 0, %s4, %s2
  %6 = sst [smem:[#allocation2]] %s0
  $region1: #{scalar_forward.1} parent=0
    #allocation3 [shape = 'u8[512]{0}', space=smem, size = 0x200, scoped, tag = 'output window, operand 0, single buffered']
    #allocation4 [shape = 's32[1]{0}', space=sflag, size = 0x4, scoped, tag = 'scoped memory for scalar_forward.1']
    %7 = vsyncpa [#allocation4], 0
    // Predicated region
    $region2: #{scalar_forward.1} parent=1 // pred_check
      _
    $region3: #{scalar_forward.1} parent=1 // pred_check_branch
      %9 = sbr.rel (0) target = $region5
    $region4: #{scalar_forward.1} parent=1 // pred_region
      _
    $region5: #{scalar_forward.1} parent=1 // pred_fallthru
      _
    %s10 = sld [smem:[#allocation2]]
    %s11 = scalar_lea.smem [#allocation3], 0
    %12 = sst [smem:[%s11]] %s10
    // Predicated region
    $region6: #{scalar_forward.1} parent=1 // pred_check
      _
    $region7: #{scalar_forward.1} parent=1 // pred_check_branch
      %14 = sbr.rel (0) target = $region9
    $region8: #{scalar_forward.1} parent=1 // pred_region
      %s16 = ssub.s32 16, 16
      %17 = vsyncadd [#allocation4], %s16
      %20 = dma.smem_to_hbm [#allocation3], 16, %s1, [#allocation4]
    $region9: #{scalar_forward.1} parent=1 // pred_fallthru
      _
    // Predicated region
    $region10: #{scalar_forward.1} parent=1 // pred_check
      _
    $region11: #{scalar_forward.1} parent=1 // pred_check_branch
      %22 = sbr.rel (0) target = $region13
    $region12: #{scalar_forward.1} parent=1 // pred_region
      %23 = dma.done [#allocation4], 16
    $region13: #{scalar_forward.1} parent=1 // pred_fallthru
      _
    %24 = sfence
    %25 = vsyncpa [#allocation4], 1

</llo_original>
